<compile_context>
chip_gen: v7x
topology: tpu7x:2x2x1
jax: 0.10.0
libtpu: 0.0.40
codegen_flags: <defaults>
</compile_context>

<pallas_src>
import functools

import jax
import jax.numpy as jnp
from jax.experimental import pallas as pl
from jax.experimental.pallas import tpu as pltpu


def _round_up(x, m):
    return ((x + m - 1) // m) * m


def _fused_backbone_head_kernel(xp_ref, w1_ref, b1_ref, w2_ref, b2_ref,
                                hw_ref, hb_ref, out_ref, acc_ref,
                                *, inv_hw, hw_total, spatial_tile, needs_mask):
    """One grid step: (batch b, spatial tile s).

    conv1 (im2col 3x3) and conv2 (1x1) are MXU matmuls with f32 accumulation;
    the GAP + Linear(C2, 1) head is folded into a per-image f32 accumulator
    (init at s==0, finalize at s==last).

    INVARIANT: the spatial axis must stay the innermost grid axis and be
    "arbitrary" (sequential). The persistent acc_ref scratch is re-initialized
    at s==0 for each image; making the spatial axis parallel or reordering the
    grid would mix partial sums across images.
    """
    s = pl.program_id(1)

    # ---- init per-image pooling accumulator (f32) ---------------------------
    @pl.when(s == 0)
    def _init():
        acc_ref[...] = jnp.zeros_like(acc_ref)

    # ---- conv1: 3x3 conv as (TS, KP) x (KP, C1) MXU matmul ------------------
    h1 = jnp.dot(xp_ref[...], w1_ref[...], preferred_element_type=jnp.float32)
    h1 = jnp.maximum(h1 + b1_ref[...], 0.0)            # bias + ReLU in f32 (VPU)

    # ---- conv2: 1x1 conv as (TS, C1) x (C1, C2) MXU matmul ------------------
    h2 = jnp.dot(h1.astype(jnp.bfloat16), w2_ref[...],
                 preferred_element_type=jnp.float32)
    h2 = jnp.maximum(h2 + b2_ref[...], 0.0)             # f32

    # ---- mask padded tail rows (only traced if H*W % TS != 0) ---------------
    if needs_mask:
        row = s * spatial_tile + jax.lax.broadcasted_iota(jnp.int32, h2.shape, 0)
        h2 = jnp.where(row < hw_total, h2, 0.0)

    # ---- fused global average pool: accumulate per-channel column sums ------
    acc_ref[...] += jnp.sum(h2, axis=0, keepdims=True)  # (1, C2)

    # ---- finalize: fold Linear(C2, 1) into the pooled sum -------------------
    @pl.when(s == pl.num_programs(1) - 1)
    def _finalize():
        weighted = acc_ref[...] * hw_ref[...]                         # (1, C2)
        logit = jnp.sum(weighted, axis=1, keepdims=True) * inv_hw + hb_ref[0]
        # Lane-dense (8, 128) store; wrapper slices out [0, 0].
        out_ref[...] = jnp.broadcast_to(logit, out_ref.shape)


def melanoma_forward(x, params, *, spatial_tile=1024):
    """Forward pass.  x: (B, Cin, H, W) float32 NCHW.  Returns (B, 1) float32 logits."""
    w1, b1, w2, b2, wl, bl = params
    B, Cin, H, W = x.shape
    C1 = w1.shape[0]
    C2 = w2.shape[0]
    HW = H * W
    K = 9 * Cin
    KP = _round_up(K, 16)                     # bf16 sublane multiple, NOT 128
    assert C1 % 128 == 0 and C2 % 128 == 0, "channel dims must be lane-aligned"

    TS = _round_up(min(spatial_tile, HW), 16)  # bf16 packs 16 rows/vreg on sublanes
    n_s = pl.cdiv(HW, TS)
    HW_pad = n_s * TS
    needs_mask = (HW_pad != HW)

    # ---- wrapper-side layout plumbing (kept out of the kernel) --------------
    # NCHW -> NHWC, zero-pad border, im2col the 3x3 neighbourhood.
    x_nhwc = jnp.transpose(x, (0, 2, 3, 1))                        # (B, H, W, Cin)
    x_padded = jnp.pad(x_nhwc, ((0, 0), (1, 1), (1, 1), (0, 0)))
    patches = [x_padded[:, dy:dy + H, dx:dx + W, :]
               for dy in range(3) for dx in range(3)]
    xp = jnp.concatenate(patches, axis=-1).reshape(B, HW, K)       # (B, HW, 9*Cin)
    xp = jnp.pad(xp, ((0, 0), (0, HW_pad - HW), (0, KP - K))).astype(jnp.bfloat16)

    # conv1 weight (C1, Cin, 3, 3) -> im2col layout (9*Cin, C1), padded to (KP, C1)
    w1_m = jnp.transpose(w1, (2, 3, 1, 0)).reshape(K, C1)
    w1_m = jnp.pad(w1_m, ((0, KP - K), (0, 0))).astype(jnp.bfloat16)
    # conv2 weight (C2, C1, 1, 1) -> (C1, C2)
    w2_m = jnp.transpose(w2.reshape(C2, C1), (1, 0)).astype(jnp.bfloat16)

    b1_v = b1.reshape(1, C1).astype(jnp.float32)
    b2_v = b2.reshape(1, C2).astype(jnp.float32)
    hw_v = wl.reshape(1, C2).astype(jnp.float32)                   # head weight
    hb_s = bl.reshape(1).astype(jnp.float32)                       # head bias -> SMEM scalar

    kernel = functools.partial(
        _fused_backbone_head_kernel,
        inv_hw=1.0 / float(HW), hw_total=HW,
        spatial_tile=TS, needs_mask=needs_mask)

    # Advisory cost estimate so XLA schedules the wrapper-side im2col around us.
    flops = 2 * B * HW_pad * (KP * C1 + C1 * C2)
    bytes_accessed = int(xp.size * 2 + w1_m.size * 2 + w2_m.size * 2
                         + (b1_v.size + b2_v.size + hw_v.size + hb_s.size) * 4
                         + B * 8 * 128 * 4)
    cost = pl.CostEstimate(flops=flops, transcendentals=0,
                           bytes_accessed=bytes_accessed)

    # VMEM budget: double-buffered xp tile (lane-padded), resident weights,
    # f32 h1/h2 temps, small vectors, output slab.  Clamp to v7x 64 MiB.
    vmem_need = (2 * TS * max(KP, 128) * 2
                 + max(KP, 8) * C1 * 2 + C1 * C2 * 2
                 + TS * C1 * 4 + TS * C2 * 4
                 + (C1 + 3 * C2) * 4
                 + 2 * 8 * 128 * 4)
    vmem_limit = int(min(64 << 20, max(32 << 20, 4 * vmem_need)))

    out = pl.pallas_call(
        kernel,
        out_shape=jax.ShapeDtypeStruct((B, 8, 128), jnp.float32),
        grid_spec=pltpu.PrefetchScalarGridSpec(
            num_scalar_prefetch=0,
            grid=(B, n_s),                                   # spatial reduction last
            in_specs=[
                pl.BlockSpec((None, TS, KP), lambda b, s: (b, s, 0)),   # im2col patches
                pl.BlockSpec((KP, C1), lambda b, s: (0, 0)),            # conv1 weight
                pl.BlockSpec((1, C1), lambda b, s: (0, 0)),             # conv1 bias
                pl.BlockSpec((C1, C2), lambda b, s: (0, 0)),            # conv2 weight
                pl.BlockSpec((1, C2), lambda b, s: (0, 0)),             # conv2 bias
                pl.BlockSpec((1, C2), lambda b, s: (0, 0)),             # head weight
                pl.BlockSpec(memory_space=pltpu.MemorySpace.SMEM),      # head bias scalar
            ],
            out_specs=pl.BlockSpec((None, 8, 128), lambda b, s: (b, 0, 0)),
            scratch_shapes=[pltpu.VMEM((1, C2), jnp.float32)],   # f32 pool accumulator
        ),
        compiler_params=pltpu.CompilerParams(
            dimension_semantics=("parallel", "arbitrary"),       # batch parallel
            vmem_limit_bytes=vmem_limit),
        cost_estimate=cost,
    )(xp, w1_m, b1_v, w2_m, b2_v, hw_v, hb_s)

    return out[:, 0, :1]                                          # (B, 1) logits


def _reference_forward(x, params):
    """Pure-JAX reference (matmul inputs bf16-rounded, like the kernel)."""
    w1, b1, w2, b2, wl, bl = params
    f32, bf16 = jnp.float32, jnp.bfloat16
    hi = jax.lax.Precision.HIGHEST
    xq = x.astype(bf16).astype(f32)
    w1q = w1.astype(bf16).astype(f32)
    w2q = w2.astype(bf16).astype(f32)
    h = jax.lax.conv_general_dilated(
        xq, w1q, window_strides=(1, 1), padding="SAME",
        dimension_numbers=("NCHW", "OIHW", "NCHW"), precision=hi)
    h = jnp.maximum(h + b1[None, :, None, None], 0.0)
    h = h.astype(bf16).astype(f32)
    h = jax.lax.conv_general_dilated(
        h, w2q, window_strides=(1, 1), padding="SAME",
        dimension_numbers=("NCHW", "OIHW", "NCHW"), precision=hi)
    h = jnp.maximum(h + b2[None, :, None, None], 0.0)
    pooled = jnp.mean(h, axis=(2, 3))            # AdaptiveAvgPool2d(1) + Flatten
    return pooled @ wl.T + bl[None, :]           # Dropout (eval) = identity; Linear(C2, 1)


if __name__ == "__main__":
    Cin, C1, C2 = 3, 128, 128                    # stand-in backbone width / feature_dim

    key = jax.random.PRNGKey(0)
    kx1, kx2, k1, k2, k3, k4, k5, k6 = jax.random.split(key, 8)
    w1 = jax.random.normal(k1, (C1, Cin, 3, 3), jnp.float32) * 0.1
    b1 = jax.random.normal(k2, (C1,), jnp.float32) * 0.05
    w2 = jax.random.normal(k3, (C2, C1, 1, 1), jnp.float32) * 0.1
    b2 = jax.random.normal(k4, (C2,), jnp.float32) * 0.05
    wl = jax.random.normal(k5, (1, C2), jnp.float32) * 0.1
    bl = jax.random.normal(k6, (1,), jnp.float32) * 0.05
    params = (w1, b1, w2, b2, wl, bl)

    # Config A: single large tile (default TS), H*W divides the tile cleanly.
    xa = jax.random.normal(kx1, (2, Cin, 16, 16), jnp.float32)
    out_a = jax.block_until_ready(jax.jit(melanoma_forward)(xa, params))
    ref_a = jax.block_until_ready(_reference_forward(xa, params))
    assert out_a.shape == (2, 1), out_a.shape
    if not jnp.allclose(out_a, ref_a, atol=5e-2, rtol=5e-2):
        raise AssertionError(f"kernel/reference mismatch (A): {out_a} vs {ref_a}")

    # Config B: multi-step spatial reduction + ragged tail (exercises the
    # accumulator across grid steps and the in-kernel tail mask).
    xb = jax.random.normal(kx2, (2, Cin, 20, 20), jnp.float32)   # HW=400, TS=128
    fwd_b = jax.jit(functools.partial(melanoma_forward, spatial_tile=128))
    out_b = jax.block_until_ready(fwd_b(xb, params))
    ref_b = jax.block_until_ready(_reference_forward(xb, params))
    assert out_b.shape == (2, 1), out_b.shape
    if not jnp.allclose(out_b, ref_b, atol=5e-2, rtol=5e-2):
        raise AssertionError(f"kernel/reference mismatch (B): {out_b} vs {ref_b}")

    print("KERNEL_OK")
</pallas_src>

<mosaic_0001>
module attributes {stable_mosaic.version = 11 : i64} {
  func.func @_fused_backbone_head_kernel(%arg0: i32, %arg1: i32, %arg2: memref<1x256x32xbf16, #tpu.memory_space<vmem>>, %arg3: memref<32x128xbf16, #tpu.memory_space<vmem>>, %arg4: memref<1x128xf32, #tpu.memory_space<vmem>>, %arg5: memref<128x128xbf16, #tpu.memory_space<vmem>>, %arg6: memref<1x128xf32, #tpu.memory_space<vmem>>, %arg7: memref<1x128xf32, #tpu.memory_space<vmem>>, %arg8: memref<1xf32, #tpu.memory_space<smem>>, %arg9: memref<1x8x128xf32, #tpu.memory_space<vmem>>, %arg10: memref<1x128xf32, #tpu.memory_space<vmem>>) attributes {dimension_semantics = [#tpu.dimension_semantics<parallel>, #tpu.dimension_semantics<arbitrary>], iteration_bounds = array<i64: 2, 1>, scalar_prefetch = 0 : i64, scratch_operands = 1 : i64, tpu.core_type = #tpu.core_type<tc>, window_params = [{transform_indices = @transform_0, window_bounds = array<i64: 1, 256, 32>}, {pipeline_mode = #tpu.pipeline_mode<synchronous>, transform_indices = @transform_1, window_bounds = array<i64: 32, 128>}, {pipeline_mode = #tpu.pipeline_mode<synchronous>, transform_indices = @transform_2, window_bounds = array<i64: 1, 128>}, {pipeline_mode = #tpu.pipeline_mode<synchronous>, transform_indices = @transform_3, window_bounds = array<i64: 128, 128>}, {pipeline_mode = #tpu.pipeline_mode<synchronous>, transform_indices = @transform_4, window_bounds = array<i64: 1, 128>}, {pipeline_mode = #tpu.pipeline_mode<synchronous>, transform_indices = @transform_5, window_bounds = array<i64: 1, 128>}, {transform_indices = @transform_6, window_bounds = array<i64: 1>}, {transform_indices = @transform_7, window_bounds = array<i64: 1, 8, 128>}]} {
    %c0_i32 = arith.constant 0 : i32
    %0 = arith.cmpi eq, %arg1, %c0_i32 : i32
    %1 = arith.extui %0 : i1 to i32
    %c0_i32_0 = arith.constant 0 : i32
    %2 = arith.cmpi ne, %1, %c0_i32_0 : i32
    scf.if %2 {
      %cst_21 = arith.constant 0.000000e+00 : f32
      %28 = vector.broadcast %cst_21 : f32 to vector<1x128xf32>
      %c0_22 = arith.constant 0 : index
      %c0_23 = arith.constant 0 : index
      %29 = vector.load %arg10[%c0_22, %c0_23] : memref<1x128xf32, #tpu.memory_space<vmem>>, vector<1x128xf32>
      tpu.vector_store %arg10[%c0_22, %c0_23], %28 {strides = array<i32>} : memref<1x128xf32, #tpu.memory_space<vmem>>, vector<1x128xf32>,
    } else {
    }
    %c0 = arith.constant 0 : index
    %c0_1 = arith.constant 0 : index
    %c0_2 = arith.constant 0 : index
    %3 = vector.load %arg2[%c0, %c0_1, %c0_2] : memref<1x256x32xbf16, #tpu.memory_space<vmem>>, vector<1x256x32xbf16>
    %4 = vector.shape_cast %3 : vector<1x256x32xbf16> to vector<256x32xbf16>
    %c0_3 = arith.constant 0 : index
    %c0_4 = arith.constant 0 : index
    %5 = vector.load %arg3[%c0_3, %c0_4] : memref<32x128xbf16, #tpu.memory_space<vmem>>, vector<32x128xbf16>
    %cst = arith.constant dense<0.000000e+00> : vector<256x128xf32>
    %6 = tpu.matmul %4, %5, %cst {dimension_numbers = #tpu.dot_dimension_numbers<[1], [0], [0], [1], [0, 0, 1, 1], [], []>} : vector<256x32xbf16>, vector<32x128xbf16>, vector<256x128xf32> -> vector<256x128xf32>
    %c0_5 = arith.constant 0 : index
    %c0_6 = arith.constant 0 : index
    %7 = vector.load %arg4[%c0_5, %c0_6] : memref<1x128xf32, #tpu.memory_space<vmem>>, vector<1x128xf32>
    %8 = vector.broadcast %7 : vector<1x128xf32> to vector<256x128xf32>
    %9 = arith.addf %6, %8 : vector<256x128xf32>
    %cst_7 = arith.constant 0.000000e+00 : f32
    %10 = vector.broadcast %cst_7 : f32 to vector<256x128xf32>
    %11 = arith.maximumf %9, %10 : vector<256x128xf32>
    %12 = arith.truncf %11 : vector<256x128xf32> to vector<256x128xbf16>
    %c0_8 = arith.constant 0 : index
    %c0_9 = arith.constant 0 : index
    %13 = vector.load %arg5[%c0_8, %c0_9] : memref<128x128xbf16, #tpu.memory_space<vmem>>, vector<128x128xbf16>
    %cst_10 = arith.constant dense<0.000000e+00> : vector<256x128xf32>
    %14 = tpu.matmul %12, %13, %cst_10 {dimension_numbers = #tpu.dot_dimension_numbers<[1], [0], [0], [1], [0, 0, 1, 1], [], []>} : vector<256x128xbf16>, vector<128x128xbf16>, vector<256x128xf32> -> vector<256x128xf32>
    %c0_11 = arith.constant 0 : index
    %c0_12 = arith.constant 0 : index
    %15 = vector.load %arg6[%c0_11, %c0_12] : memref<1x128xf32, #tpu.memory_space<vmem>>, vector<1x128xf32>
    %16 = vector.broadcast %15 : vector<1x128xf32> to vector<256x128xf32>
    %17 = arith.addf %14, %16 : vector<256x128xf32>
    %cst_13 = arith.constant 0.000000e+00 : f32
    %18 = vector.broadcast %cst_13 : f32 to vector<256x128xf32>
    %19 = arith.maximumf %17, %18 : vector<256x128xf32>
    %c0_14 = arith.constant 0 : index
    %c0_15 = arith.constant 0 : index
    %20 = vector.load %arg10[%c0_14, %c0_15] : memref<1x128xf32, #tpu.memory_space<vmem>>, vector<1x128xf32>
    %cst_16 = arith.constant dense<0.000000e+00> : vector<128xf32>
    %21 = vector.multi_reduction <add>, %19, %cst_16 [0] : vector<256x128xf32> to vector<128xf32>
    %22 = vector.shape_cast %21 : vector<128xf32> to vector<1x128xf32>
    %23 = arith.addf %20, %22 : vector<1x128xf32>
    %c0_17 = arith.constant 0 : index
    %c0_18 = arith.constant 0 : index
    %24 = vector.load %arg10[%c0_17, %c0_18] : memref<1x128xf32, #tpu.memory_space<vmem>>, vector<1x128xf32>
    tpu.vector_store %arg10[%c0_17, %c0_18], %23 {strides = array<i32>} : memref<1x128xf32, #tpu.memory_space<vmem>>, vector<1x128xf32>,
    %c0_i32_19 = arith.constant 0 : i32
    %25 = arith.cmpi eq, %arg1, %c0_i32_19 : i32
    %26 = arith.extui %25 : i1 to i32
    %c0_i32_20 = arith.constant 0 : i32
    %27 = arith.cmpi ne, %26, %c0_i32_20 : i32
    scf.if %27 {
      %c0_21 = arith.constant 0 : index
      %c0_22 = arith.constant 0 : index
      %28 = vector.load %arg10[%c0_21, %c0_22] : memref<1x128xf32, #tpu.memory_space<vmem>>, vector<1x128xf32>
      %c0_23 = arith.constant 0 : index
      %c0_24 = arith.constant 0 : index
      %29 = vector.load %arg7[%c0_23, %c0_24] : memref<1x128xf32, #tpu.memory_space<vmem>>, vector<1x128xf32>
      %30 = arith.mulf %28, %29 : vector<1x128xf32>
      %cst_25 = arith.constant dense<0.000000e+00> : vector<1xf32>
      %31 = vector.multi_reduction <add>, %30, %cst_25 [1] : vector<1x128xf32> to vector<1xf32>
      %32 = vector.shape_cast %31 : vector<1xf32> to vector<1x1xf32>
      %cst_26 = arith.constant 3.906250e-03 : f32
      %33 = vector.broadcast %cst_26 : f32 to vector<1x1xf32>
      %34 = arith.mulf %32, %33 : vector<1x1xf32>
      %c0_27 = arith.constant 0 : index
      %35 = memref.load %arg8[%c0_27] : memref<1xf32, #tpu.memory_space<smem>>
      %36 = vector.broadcast %35 : f32 to vector<1x1xf32>
      %37 = arith.addf %34, %36 : vector<1x1xf32>
      %38 = vector.shape_cast %37 : vector<1x1xf32> to vector<1x1xf32>
      %39 = vector.broadcast %38 : vector<1x1xf32> to vector<8x128xf32>
      %c0_28 = arith.constant 0 : index
      %c0_29 = arith.constant 0 : index
      %c0_30 = arith.constant 0 : index
      %40 = vector.load %arg9[%c0_28, %c0_29, %c0_30] : memref<1x8x128xf32, #tpu.memory_space<vmem>>, vector<1x8x128xf32>
      %41 = vector.shape_cast %40 : vector<1x8x128xf32> to vector<8x128xf32>
      %42 = vector.shape_cast %39 : vector<8x128xf32> to vector<1x8x128xf32>
      tpu.vector_store %arg9[%c0_28, %c0_29, %c0_30], %42 {strides = array<i32>} : memref<1x8x128xf32, #tpu.memory_space<vmem>>, vector<1x8x128xf32>,
    } else {
    }
    return
  }
  func.func @transform_0(%arg0: i32, %arg1: i32) -> (i32, i32, i32) {
    %c0_i32 = arith.constant 0 : i32
    %c0_i32_0 = arith.constant 0 : i32
    return %arg0, %arg1, %c0_i32 : i32, i32, i32
  }
  func.func @transform_1(%arg0: i32, %arg1: i32) -> (i32, i32) {
    %c0_i32 = arith.constant 0 : i32
    %c0_i32_0 = arith.constant 0 : i32
    %c0_i32_1 = arith.constant 0 : i32
    return %c0_i32, %c0_i32_0 : i32, i32
  }
  func.func @transform_2(%arg0: i32, %arg1: i32) -> (i32, i32) {
    %c0_i32 = arith.constant 0 : i32
    %c0_i32_0 = arith.constant 0 : i32
    %c0_i32_1 = arith.constant 0 : i32
    return %c0_i32, %c0_i32_0 : i32, i32
  }
  func.func @transform_3(%arg0: i32, %arg1: i32) -> (i32, i32) {
    %c0_i32 = arith.constant 0 : i32
    %c0_i32_0 = arith.constant 0 : i32
    %c0_i32_1 = arith.constant 0 : i32
    return %c0_i32, %c0_i32_0 : i32, i32
  }
  func.func @transform_4(%arg0: i32, %arg1: i32) -> (i32, i32) {
    %c0_i32 = arith.constant 0 : i32
    %c0_i32_0 = arith.constant 0 : i32
    %c0_i32_1 = arith.constant 0 : i32
    return %c0_i32, %c0_i32_0 : i32, i32
  }
  func.func @transform_5(%arg0: i32, %arg1: i32) -> (i32, i32) {
    %c0_i32 = arith.constant 0 : i32
    %c0_i32_0 = arith.constant 0 : i32
    %c0_i32_1 = arith.constant 0 : i32
    return %c0_i32, %c0_i32_0 : i32, i32
  }
  func.func @transform_6(%arg0: i32, %arg1: i32) -> i32 {
    %c0_i32 = arith.constant 0 : i32
    %c0_i32_0 = arith.constant 0 : i32
    return %c0_i32 : i32
  }
  func.func @transform_7(%arg0: i32, %arg1: i32) -> (i32, i32, i32) {
    %c0_i32 = arith.constant 0 : i32
    %c0_i32_0 = arith.constant 0 : i32
    %c0_i32_1 = arith.constant 0 : i32
    return %arg0, %c0_i32, %c0_i32_0 : i32, i32, i32
  }
}

</mosaic_0001>

<llo_original>
// kernel: melanoma_forward.1
$region0: #{melanoma_forward.1}
  #allocation0 [shape = 'u32[]', space=smem, size = 0x4, offset = 0x4, fixed_abs, tag = 'smem constant byte address 0x4 - core index']
  #allocation1 [shape = 'u32[144,128]{1,0:T(1,128)}', space=vmem, size = 0x12000, scoped, tag = 'internal scratch']
  #allocation2 [shape = 'f32[1,128]{1,0:T(1,128)}', space=vmem, size = 0x200, scoped, tag = 'scratch operand']
  #allocation3 [shape = 'f32[1]{0:T(128)S(6)}', space=smem, size = 0x200, scoped, tag = 'scoped memory for melanoma_forward.1']
  %s0 = inlined_call_operand.vmem [shape: bf16[2,256,32], index: 0, kind: input, shape index: {}]
  %s1 = inlined_call_operand.vmem [shape: bf16[32,128], index: 1, kind: input, shape index: {}]
  %s2 = inlined_call_operand.vmem [shape: f32[1,128], index: 2, kind: input, shape index: {}]
  %s3 = inlined_call_operand.vmem [shape: bf16[128,128], index: 3, kind: input, shape index: {}]
  %s4 = inlined_call_operand.vmem [shape: f32[1,128], index: 4, kind: input, shape index: {}]
  %s5 = inlined_call_operand.vmem [shape: f32[1,128], index: 5, kind: input, shape index: {}]
  %s6 = inlined_call_operand.<no memory space> [shape: f32[1], index: 6, kind: input, shape index: {}]
  %s7 = inlined_call_operand.vmem [shape: f32[2,8,128], index: 7, kind: output, shape index: {}]
  %s8 = sld [smem:[#allocation0]]
  $region69: #{melanoma_forward.1} parent=0
    _
  %s10 = ssub.s32 1, %s8
  %s11 = scalar_select 0, %s10, %s8
  %12 = sst [smem:[#allocation3]] %s6
  loop: start=0, step=1, limit=4
  $region2: #{melanoma_forward.1} parent=0 // loop_pre_header
    _
  $region3: #{melanoma_forward.1} parent=0 // loop_header
    %s14 = sphi 0, %s18
    %p15 = scmp.ge.s32.totalorder %s14, 4
    %s21 = sphi 0, %s33
    %s22 = sphi 0, %s29
    %s23 = sphi 0, %s21
    %s24 = sphi 0, %s22
    %s25 = sphi 0, %s23
    %s26 = sphi 0, %s24
    %s38 = sphi 0, %s40
    %s41 = sphi 0, %s38
    %s42 = sphi 0, %s41
    %s58 = sphi 0, %s42
    %s62 = sphi 0, %s62
    %s64 = sphi 0, %s62
    %s65 = sphi 0, %s64
    %s79 = sphi 0, %s65
    %s83 = sphi 0, %s83
    %s85 = sphi 0, %s83
    %s86 = sphi 0, %s85
    %s100 = sphi 0, %s86
    %s104 = sphi 0, %s104
    %s106 = sphi 0, %s104
    %s107 = sphi 0, %s106
    %s121 = sphi 0, %s107
    %s125 = sphi 0, %s125
    %s127 = sphi 0, %s125
    %s128 = sphi 0, %s127
    %s142 = sphi 0, %s128
    %s146 = sphi 0, %s146
    %s148 = sphi 0, %s146
    %s149 = sphi 0, %s148
    %s163 = sphi 0, %s149
    %s167 = sphi 0, %s167
    %s169 = sphi 0, %s167
    %s170 = sphi 0, %s169
    %s184 = sphi 0, %s170
    %s190 = sphi 0, %s192
    %s193 = sphi 0, %s190
    %s194 = sphi 0, %s193
    %s210 = sphi 0, %s194
  $region4: #{melanoma_forward.1} parent=0 // loop_header_branch
    %17 = sbr.rel (%p15) target = $region8
  $region5: #{melanoma_forward.1} parent=0 // loop_body
    %s19 = ssub.s32 %s14, 1
    %s20 = ssub.s32 %s14, 2
    %s27 = sadd.s32 1, %s22
    %p28 = scmp.ge.s32.totalorder %s27, 1
    %s29 = scalar_select %p28, 0, %s27
    %s30 = sadd.s32 1, %s21
    %s31 = scalar_select %p28, %s30, %s21
    %p32 = scmp.ge.s32.totalorder %s31, 2
    %s33 = scalar_select %p32, 0, %s31
    %s34 = ssub.s32 %s21, %s33
    %s35 = ssub.s32 %s22, %s29
    %s36 = sor.u32 %s34, %s35
    %p37 = scmp.eq.s32.totalorder %s36, 0
    %s39 = sadd.s32 %s38, 1
    %s40 = scalar_select %p37, %s38, %s39
    %p43 = pneg %p37
    %p44 = scmp.eq.s32.totalorder %s14, 1
    %p45 = por %p43, %p44
    %p46 = scmp.ne.s32.totalorder %s38, %s41
    %p47 = scmp.eq.s32.totalorder %s14, 0
    %p48 = por %p46, %p47
    %p49 = scmp.ne.s32.totalorder %s38, %s41
    %p50 = scmp.eq.s32.totalorder %s19, 1
    %p51 = por %p49, %p50
    %p52 = scmp.ne.s32.totalorder %s41, %s42
    %p53 = scmp.eq.s32.totalorder %s19, 0
    %p54 = por %p52, %p53
    %p55 = scmp.ne.s32.totalorder %s41, %s42
    %p56 = scmp.eq.s32.totalorder %s20, 1
    %p57 = por %p55, %p56
    %p59 = scmp.ne.s32.totalorder %s42, %s58
    %p60 = scmp.eq.s32.totalorder %s20, 0
    %p61 = por %p59, %p60
    %s63 = sadd.s32 %s62, 1
    %p66 = scmp.eq.s32.totalorder %s14, 1
    %p67 = scmp.ne.s32.totalorder %s62, %s64
    %p68 = scmp.eq.s32.totalorder %s14, 0
    %p69 = por %p67, %p68
    %p70 = scmp.ne.s32.totalorder %s62, %s64
    %p71 = scmp.eq.s32.totalorder %s19, 1
    %p72 = por %p70, %p71
    %p73 = scmp.ne.s32.totalorder %s64, %s65
    %p74 = scmp.eq.s32.totalorder %s19, 0
    %p75 = por %p73, %p74
    %p76 = scmp.ne.s32.totalorder %s64, %s65
    %p77 = scmp.eq.s32.totalorder %s20, 1
    %p78 = por %p76, %p77
    %p80 = scmp.ne.s32.totalorder %s65, %s79
    %p81 = scmp.eq.s32.totalorder %s20, 0
    %p82 = por %p80, %p81
    %s84 = sadd.s32 %s83, 1
    %p87 = scmp.eq.s32.totalorder %s14, 1
    %p88 = scmp.ne.s32.totalorder %s83, %s85
    %p89 = scmp.eq.s32.totalorder %s14, 0
    %p90 = por %p88, %p89
    %p91 = scmp.ne.s32.totalorder %s83, %s85
    %p92 = scmp.eq.s32.totalorder %s19, 1
    %p93 = por %p91, %p92
    %p94 = scmp.ne.s32.totalorder %s85, %s86
    %p95 = scmp.eq.s32.totalorder %s19, 0
    %p96 = por %p94, %p95
    %p97 = scmp.ne.s32.totalorder %s85, %s86
    %p98 = scmp.eq.s32.totalorder %s20, 1
    %p99 = por %p97, %p98
    %p101 = scmp.ne.s32.totalorder %s86, %s100
    %p102 = scmp.eq.s32.totalorder %s20, 0
    %p103 = por %p101, %p102
    %s105 = sadd.s32 %s104, 1
    %p108 = scmp.eq.s32.totalorder %s14, 1
    %p109 = scmp.ne.s32.totalorder %s104, %s106
    %p110 = scmp.eq.s32.totalorder %s14, 0
    %p111 = por %p109, %p110
    %p112 = scmp.ne.s32.totalorder %s104, %s106
    %p113 = scmp.eq.s32.totalorder %s19, 1
    %p114 = por %p112, %p113
    %p115 = scmp.ne.s32.totalorder %s106, %s107
    %p116 = scmp.eq.s32.totalorder %s19, 0
    %p117 = por %p115, %p116
    %p118 = scmp.ne.s32.totalorder %s106, %s107
    %p119 = scmp.eq.s32.totalorder %s20, 1
    %p120 = por %p118, %p119
    %p122 = scmp.ne.s32.totalorder %s107, %s121
    %p123 = scmp.eq.s32.totalorder %s20, 0
    %p124 = por %p122, %p123
    %s126 = sadd.s32 %s125, 1
    %p129 = scmp.eq.s32.totalorder %s14, 1
    %p130 = scmp.ne.s32.totalorder %s125, %s127
    %p131 = scmp.eq.s32.totalorder %s14, 0
    %p132 = por %p130, %p131
    %p133 = scmp.ne.s32.totalorder %s125, %s127
    %p134 = scmp.eq.s32.totalorder %s19, 1
    %p135 = por %p133, %p134
    %p136 = scmp.ne.s32.totalorder %s127, %s128
    %p137 = scmp.eq.s32.totalorder %s19, 0
    %p138 = por %p136, %p137
    %p139 = scmp.ne.s32.totalorder %s127, %s128
    %p140 = scmp.eq.s32.totalorder %s20, 1
    %p141 = por %p139, %p140
    %p143 = scmp.ne.s32.totalorder %s128, %s142
    %p144 = scmp.eq.s32.totalorder %s20, 0
    %p145 = por %p143, %p144
    %s147 = sadd.s32 %s146, 1
    %p150 = scmp.eq.s32.totalorder %s14, 1
    %p151 = scmp.ne.s32.totalorder %s146, %s148
    %p152 = scmp.eq.s32.totalorder %s14, 0
    %p153 = por %p151, %p152
    %p154 = scmp.ne.s32.totalorder %s146, %s148
    %p155 = scmp.eq.s32.totalorder %s19, 1
    %p156 = por %p154, %p155
    %p157 = scmp.ne.s32.totalorder %s148, %s149
    %p158 = scmp.eq.s32.totalorder %s19, 0
    %p159 = por %p157, %p158
    %p160 = scmp.ne.s32.totalorder %s148, %s149
    %p161 = scmp.eq.s32.totalorder %s20, 1
    %p162 = por %p160, %p161
    %p164 = scmp.ne.s32.totalorder %s149, %s163
    %p165 = scmp.eq.s32.totalorder %s20, 0
    %p166 = por %p164, %p165
    %s168 = sadd.s32 %s167, 1
    %p171 = scmp.eq.s32.totalorder %s14, 1
    %p172 = scmp.ne.s32.totalorder %s167, %s169
    %p173 = scmp.eq.s32.totalorder %s14, 0
    %p174 = por %p172, %p173
    %p175 = scmp.ne.s32.totalorder %s167, %s169
    %p176 = scmp.eq.s32.totalorder %s19, 1
    %p177 = por %p175, %p176
    %p178 = scmp.ne.s32.totalorder %s169, %s170
    %p179 = scmp.eq.s32.totalorder %s19, 0
    %p180 = por %p178, %p179
    %p181 = scmp.ne.s32.totalorder %s169, %s170
    %p182 = scmp.eq.s32.totalorder %s20, 1
    %p183 = por %p181, %p182
    %p185 = scmp.ne.s32.totalorder %s170, %s184
    %p186 = scmp.eq.s32.totalorder %s20, 0
    %p187 = por %p185, %p186
    %s188 = ssub.s32 %s21, %s33
    %p189 = scmp.eq.s32.totalorder %s188, 0
    %s191 = sadd.s32 %s190, 1
    %s192 = scalar_select %p189, %s190, %s191
    %p195 = pneg %p189
    %p196 = scmp.eq.s32.totalorder %s14, 1
    %p197 = por %p195, %p196
    %p198 = scmp.ne.s32.totalorder %s190, %s193
    %p199 = scmp.eq.s32.totalorder %s14, 0
    %p200 = por %p198, %p199
    %p201 = scmp.ne.s32.totalorder %s190, %s193
    %p202 = scmp.eq.s32.totalorder %s19, 1
    %p203 = por %p201, %p202
    %p204 = scmp.ne.s32.totalorder %s193, %s194
    %p205 = scmp.eq.s32.totalorder %s19, 0
    %p206 = por %p204, %p205
    %p207 = scmp.ne.s32.totalorder %s193, %s194
    %p208 = scmp.eq.s32.totalorder %s20, 1
    %p209 = por %p207, %p208
    %p211 = scmp.ne.s32.totalorder %s194, %s210
    %p212 = scmp.eq.s32.totalorder %s20, 0
    %p213 = por %p211, %p212
    %p214 = scmp.le.s32.totalorder 1, %s14
    %p215 = scmp.lt.s32.totalorder %s14, 3
    %p216 = pnand %p214, %p215
    %p217 = pneg %p216
    // Predicated region
    $region9: #{melanoma_forward.1} parent=5 // pred_check
      _
    $region10: #{melanoma_forward.1} parent=5 // pred_check_branch
      %219 = sbr.rel (%p216) target = $region12
    $region11: #{melanoma_forward.1} parent=5 // pred_region
      %s220 = ssub.s32 %s14, 1
      // Predicated region
      $region13: #{melanoma_forward.1} parent=11 // pred_check
        %p221 = pneg %p75
      $region14: #{melanoma_forward.1} parent=11 // pred_check_branch
        %223 = sbr.rel (%p221) target = $region16
      $region15: #{melanoma_forward.1} parent=11 // pred_region
        _
      $region16: #{melanoma_forward.1} parent=11 // pred_fallthru
        _
      // Predicated region
      $region17: #{melanoma_forward.1} parent=11 // pred_check
        %p224 = pneg %p96
      $region18: #{melanoma_forward.1} parent=11 // pred_check_branch
        %226 = sbr.rel (%p224) target = $region20
      $region19: #{melanoma_forward.1} parent=11 // pred_region
        _
      $region20: #{melanoma_forward.1} parent=11 // pred_fallthru
        _
      // Predicated region
      $region21: #{melanoma_forward.1} parent=11 // pred_check
        %p227 = pneg %p117
      $region22: #{melanoma_forward.1} parent=11 // pred_check_branch
        %229 = sbr.rel (%p227) target = $region24
      $region23: #{melanoma_forward.1} parent=11 // pred_region
        _
      $region24: #{melanoma_forward.1} parent=11 // pred_fallthru
        _
      // Predicated region
      $region25: #{melanoma_forward.1} parent=11 // pred_check
        %p230 = pneg %p138
      $region26: #{melanoma_forward.1} parent=11 // pred_check_branch
        %232 = sbr.rel (%p230) target = $region28
      $region27: #{melanoma_forward.1} parent=11 // pred_region
        _
      $region28: #{melanoma_forward.1} parent=11 // pred_fallthru
        _
      // Predicated region
      $region29: #{melanoma_forward.1} parent=11 // pred_check
        %p233 = pneg %p159
      $region30: #{melanoma_forward.1} parent=11 // pred_check_branch
        %235 = sbr.rel (%p233) target = $region32
      $region31: #{melanoma_forward.1} parent=11 // pred_region
        _
      $region32: #{melanoma_forward.1} parent=11 // pred_fallthru
        _
      // Predicated region
      $region33: #{melanoma_forward.1} parent=11 // pred_check
        %p236 = pneg %p180
      $region34: #{melanoma_forward.1} parent=11 // pred_check_branch
        %238 = sbr.rel (%p236) target = $region36
      $region35: #{melanoma_forward.1} parent=11 // pred_region
        _
      $region36: #{melanoma_forward.1} parent=11 // pred_fallthru
        _
    $region12: #{melanoma_forward.1} parent=5 // pred_fallthru
      _
    %p239 = scmp.lt.s32.totalorder %s14, 2
    // Predicated region
    $region37: #{melanoma_forward.1} parent=5 // pred_check
      %p240 = pneg %p239
    $region38: #{melanoma_forward.1} parent=5 // pred_check_branch
      %242 = sbr.rel (%p240) target = $region40
    $region39: #{melanoma_forward.1} parent=5 // pred_region
      // Predicated region
      $region41: #{melanoma_forward.1} parent=39 // pred_check
        %p243 = pneg %p48
      $region42: #{melanoma_forward.1} parent=39 // pred_check_branch
        %245 = sbr.rel (%p243) target = $region44
      $region43: #{melanoma_forward.1} parent=39 // pred_region
        %s246 = smul.u32 32, %s22
        %p247 = scmp.lt.s32.totalorder %s21, 1
        %s248 = scalar_select %p247, %s21, 1
        %p249 = scmp.lt.s32.totalorder %s246, 31
        %s250 = scalar_select %p249, %s246, 31
        %s251 = smul.addr %s248, 32
        %s252 = sadd.s32 %s250, %s251
        %s253 = smul.addr %s252, 4
        %s254 = scalar_lea.vmem %s0, %s253
        %s255 = smul.u32 32, %s22
      $region44: #{melanoma_forward.1} parent=39 // pred_fallthru
        _
    $region40: #{melanoma_forward.1} parent=5 // pred_fallthru
      _
    %p256 = scmp.le.s32.totalorder 1, %s14
    %p257 = scmp.lt.s32.totalorder %s14, 3
    %p258 = pnand %p256, %p257
    %p259 = pneg %p258
    // Predicated region
    $region45: #{melanoma_forward.1} parent=5 // pred_check
      _
    $region46: #{melanoma_forward.1} parent=5 // pred_check_branch
      %261 = sbr.rel (%p258) target = $region48
    $region47: #{melanoma_forward.1} parent=5 // pred_region
      %s262 = ssub.s32 %s14, 1
      %s263 = smul.u32 32, %s24
      %p264 = scmp.lt.s32.totalorder %s23, 1
      %s265 = scalar_select %p264, %s23, 1
      %p266 = scmp.lt.s32.totalorder %s263, 31
      %s267 = scalar_select %p266, %s263, 31
      %s268 = smul.addr %s265, 32
      %s269 = sadd.s32 %s267, %s268
      %s270 = smul.addr %s269, 4
      %s271 = scalar_lea.vmem %s0, %s270
      %p272 = pneg %p54
      %p273 = pneg %p51
      %p274 = pneg %p75
      %p275 = pneg %p72
      %p276 = pneg %p96
      %p277 = pneg %p93
      %p278 = pneg %p117
      %p279 = pneg %p114
      %p280 = pneg %p138
      %p281 = pneg %p135
      %p282 = pneg %p159
      %p283 = pneg %p156
      %p284 = pneg %p180
      %p285 = pneg %p177
      %p286 = pneg %p206
      %p287 = pneg %p203
      %p288 = scmp.lt.s32.totalorder %s23, 1
      %s289 = scalar_select %p288, %s23, 1
      %s290 = smul.addr %s289, 8
      %s291 = scalar_lea.vmem %s7, %s290
      %s292 = smul.u32 32, %s24
      %p293 = scmp.lt.s32.totalorder %s23, 1
      %s294 = scalar_select %p293, %s23, 1
      %p295 = scmp.lt.s32.totalorder %s292, 31
      %s296 = scalar_select %p295, %s292, 31
      %s297 = smul.addr %s294, 32
      %s298 = sadd.s32 %s296, %s297
      %s299 = smul.addr %s298, 4
      %s300 = scalar_lea.vmem %s0, %s299
      %s301 = smul.u32 32, %s24
      %p302 = scmp.lt.s32.totalorder %s23, 1
      %s303 = scalar_select %p302, %s23, 1
      %s304 = smul.addr %s303, 8
      %s305 = scalar_lea.vmem %s7, %s304
      %p307 = scmp.eq.s32.totalorder %s24, 0
      // Predicated region
      $region49: #{melanoma_forward.1} parent=47 // pred_check
        %p308 = pneg %p307
      $region50: #{melanoma_forward.1} parent=47 // pred_check_branch
        %310 = sbr.rel (%p308) target = $region52
      $region51: #{melanoma_forward.1} parent=47 // pred_region
        %311 = vst [vmem:[#allocation2] sm:$0x1] 0.0
      $region52: #{melanoma_forward.1} parent=47 // pred_fallthru
        _
      %v312 = vld [vmem:[%s300] sm:$0xf]
      %v313 = vld [vmem:[%s300 + $0x4] sm:$0xf]
      %v314 = vld [vmem:[%s300 + $0x8] sm:$0xf]
      %v315 = vld [vmem:[%s300 + $0xc] sm:$0xf]
      %v316 = vld [vmem:[%s300 + $0x10] sm:$0xf]
      %v317 = vld [vmem:[%s300 + $0x14] sm:$0xf]
      %v318 = vld [vmem:[%s300 + $0x18] sm:$0xf]
      %v319 = vld [vmem:[%s300 + $0x1c] sm:$0xf]
      %v320 = vld [vmem:[%s300 + $0x20] sm:$0xf]
      %v321 = vld [vmem:[%s300 + $0x24] sm:$0xf]
      %v322 = vld [vmem:[%s300 + $0x28] sm:$0xf]
      %v323 = vld [vmem:[%s300 + $0x2c] sm:$0xf]
      %v324 = vld [vmem:[%s300 + $0x30] sm:$0xf]
      %v325 = vld [vmem:[%s300 + $0x34] sm:$0xf]
      %v326 = vld [vmem:[%s300 + $0x38] sm:$0xf]
      %v327 = vld [vmem:[%s300 + $0x3c] sm:$0xf]
      %v328 = vld [vmem:[%s300 + $0x40] sm:$0xf]
      %v329 = vld [vmem:[%s300 + $0x44] sm:$0xf]
      %v330 = vld [vmem:[%s300 + $0x48] sm:$0xf]
      %v331 = vld [vmem:[%s300 + $0x4c] sm:$0xf]
      %v332 = vld [vmem:[%s300 + $0x50] sm:$0xf]
      %v333 = vld [vmem:[%s300 + $0x54] sm:$0xf]
      %v334 = vld [vmem:[%s300 + $0x58] sm:$0xf]
      %v335 = vld [vmem:[%s300 + $0x5c] sm:$0xf]
      %v336 = vld [vmem:[%s300 + $0x60] sm:$0xf]
      %v337 = vld [vmem:[%s300 + $0x64] sm:$0xf]
      %v338 = vld [vmem:[%s300 + $0x68] sm:$0xf]
      %v339 = vld [vmem:[%s300 + $0x6c] sm:$0xf]
      %v340 = vld [vmem:[%s300 + $0x70] sm:$0xf]
      %v341 = vld [vmem:[%s300 + $0x74] sm:$0xf]
      %v342 = vld [vmem:[%s300 + $0x78] sm:$0xf]
      %v343 = vld [vmem:[%s300 + $0x7c] sm:$0xf]
      %v344 = vld [vmem:[%s1] sm:$0xf]
      %v345 = vld [vmem:[%s1 + $0x4] sm:$0xf]
      %v346 = vld [vmem:[%s1 + $0x8] sm:$0xf]
      %v347 = vld [vmem:[%s1 + $0xc] sm:$0xf]
      %v348 = vld [vmem:[%s2] sm:$0x1]
      %v350 = vlaneseq
      %v351 = vshrl.u32 %v350, 7
      %v352 = vsub.s32 0, %v351
      %v353 = vrot.slane %v348, %v352
      %v387 = vunpack.c.l.b16 %v312
      %v388 = vunpack.c.l.b16 %v313
      %v389 = vunpack.c.l.b16 %v314
      %v390 = vunpack.c.l.b16 %v315
      %v391 = vunpack.c.l.b16 %v316
      %v392 = vunpack.c.l.b16 %v317
      %v393 = vunpack.c.l.b16 %v318
      %v394 = vunpack.c.l.b16 %v319
      %v395 = vunpack.c.l.b16 %v320
      %v396 = vunpack.c.l.b16 %v321
      %v397 = vunpack.c.l.b16 %v322
      %v398 = vunpack.c.l.b16 %v323
      %v399 = vunpack.c.l.b16 %v324
      %v400 = vunpack.c.l.b16 %v325
      %v401 = vunpack.c.l.b16 %v326
      %v402 = vunpack.c.l.b16 %v327
      %v403 = vunpack.c.l.b16 %v328
      %v404 = vunpack.c.l.b16 %v329
      %v405 = vunpack.c.l.b16 %v330
      %v406 = vunpack.c.l.b16 %v331
      %v407 = vunpack.c.l.b16 %v332
      %v408 = vunpack.c.l.b16 %v333
      %v409 = vunpack.c.l.b16 %v334
      %v410 = vunpack.c.l.b16 %v335
      %v411 = vunpack.c.l.b16 %v336
      %v412 = vunpack.c.l.b16 %v337
      %v413 = vunpack.c.l.b16 %v338
      %v414 = vunpack.c.l.b16 %v339
      %v415 = vunpack.c.l.b16 %v340
      %v416 = vunpack.c.l.b16 %v341
      %v417 = vunpack.c.l.b16 %v342
      %v418 = vunpack.c.l.b16 %v343
      %v419 = vpack.c.b16 %v388, %v387
      %v420 = vpack.c.b16 %v390, %v389
      %v421 = vpack.c.b16 %v392, %v391
      %v422 = vpack.c.b16 %v394, %v393
      %v423 = vpack.c.b16 %v396, %v395
      %v424 = vpack.c.b16 %v398, %v397
      %v425 = vpack.c.b16 %v400, %v399
      %v426 = vpack.c.b16 %v402, %v401
      %v427 = vpack.c.b16 %v404, %v403
      %v428 = vpack.c.b16 %v406, %v405
      %v429 = vpack.c.b16 %v408, %v407
      %v430 = vpack.c.b16 %v410, %v409
      %v431 = vpack.c.b16 %v412, %v411
      %v432 = vpack.c.b16 %v414, %v413
      %v433 = vpack.c.b16 %v416, %v415
      %v434 = vpack.c.b16 %v418, %v417
      %v439 = vunpack.c.l.b16 %v344
      %v440 = vunpack.c.l.b16 %v345
      %v441 = vunpack.c.l.b16 %v346
      %v442 = vunpack.c.l.b16 %v347
      %v443 = vpack.c.b16 %v440, %v439
      %v444 = vpack.c.b16 %v442, %v441
      %vm447 = vcmask 261120
      %v449 = vsel %vm447, %v419, 0
      %v452 = vsel %vm447, %v420, 0
      %v455 = vsel %vm447, %v421, 0
      %v458 = vsel %vm447, %v422, 0
      %v461 = vsel %vm447, %v423, 0
      %v464 = vsel %vm447, %v424, 0
      %v467 = vsel %vm447, %v425, 0
      %v470 = vsel %vm447, %v426, 0
      %v473 = vsel %vm447, %v427, 0
      %v476 = vsel %vm447, %v428, 0
      %v479 = vsel %vm447, %v429, 0
      %v482 = vsel %vm447, %v430, 0
      %v485 = vsel %vm447, %v431, 0
      %v488 = vsel %vm447, %v432, 0
      %v491 = vsel %vm447, %v433, 0
      %v494 = vsel %vm447, %v434, 0
      %496 = vmatprep.subr.bf16.mxu0 0
      %497 = vmatpush1.bf16.msra.mxu0 %v443
      %498 = vmatprep.subr.bf16.mxu0 0
      %499 = vmatpush1.bf16.msra.mxu0 %v444
      %500 = vmatprep.subr.bf16.mxu0 0
      %501 = vmatpush1.bf16.msra.mxu0 0
      %502 = vmatprep.subr.bf16.mxu0 0
      %503 = vmatpush1.bf16.msra.mxu0 0
      %504 = vmatprep.subr.bf16.mxu0 0
      %505 = vmatpush1.bf16.msra.mxu0 0
      %506 = vmatprep.subr.bf16.mxu0 0
      %507 = vmatpush1.bf16.msra.mxu0 0
      %508 = vmatprep.subr.bf16.mxu0 0
      %509 = vmatpush1.bf16.msra.mxu0 0
      %510 = vmatprep.subr.bf16.mxu0 0
      %511 = vmatpush1.bf16.msra.mxu0 0
      %512 = vmatprep.subr.bf16.mxu0 0
      %513 = vmatpush1.bf16.msra.mxu0 0
      %514 = vmatprep.subr.bf16.mxu0 0
      %515 = vmatpush1.bf16.msra.mxu0 0
      %516 = vmatprep.subr.bf16.mxu0 0
      %517 = vmatpush1.bf16.msra.mxu0 0
      %518 = vmatprep.subr.bf16.mxu0 0
      %519 = vmatpush1.bf16.msra.mxu0 0
      %520 = vmatprep.subr.bf16.mxu0 0
      %521 = vmatpush1.bf16.msra.mxu0 0
      %522 = vmatprep.subr.bf16.mxu0 0
      %523 = vmatpush1.bf16.msra.mxu0 0
      %524 = vmatprep.subr.bf16.mxu0 0
      %525 = vmatpush1.bf16.msra.mxu0 0
      %526 = vmatprep.subr.bf16.mxu0 0
      %527 = vmatpush1.bf16.msra.mxu0 0
      %528 = vmatprep.mubr.bf16.mxu0 0
      %529 = vmatmul.mubr.bf16.gmra.mrb[0].mxu0 %v449
      %v530 = vpop.f32.mrb[0].mxu0
      %v531 = vadd.f32 %v353, %v530
      %v532 = vpop.f32.mrb[0].mxu0
      %v533 = vpop.f32.mrb[0].mxu0
      %v534 = vadd.f32 %v353, %v533
      %v535 = vpop.f32.mrb[0].mxu0
      %536 = vmatprep.mubr.bf16.mxu0 0
      %537 = vmatmul.mubr.bf16.gmra.mrb[0].mxu0 %v452
      %v538 = vpop.f32.mrb[0].mxu0
      %v539 = vadd.f32 %v353, %v538
      %v540 = vpop.f32.mrb[0].mxu0
      %v541 = vpop.f32.mrb[0].mxu0
      %v542 = vadd.f32 %v353, %v541
      %v543 = vpop.f32.mrb[0].mxu0
      %544 = vmatprep.mubr.bf16.mxu0 0
      %545 = vmatmul.mubr.bf16.gmra.mrb[0].mxu0 %v455
      %v546 = vpop.f32.mrb[0].mxu0
      %v547 = vadd.f32 %v353, %v546
      %v548 = vpop.f32.mrb[0].mxu0
      %v549 = vpop.f32.mrb[0].mxu0
      %v550 = vadd.f32 %v353, %v549
      %v551 = vpop.f32.mrb[0].mxu0
      %552 = vmatprep.mubr.bf16.mxu0 0
      %553 = vmatmul.mubr.bf16.gmra.mrb[0].mxu0 %v458
      %v554 = vpop.f32.mrb[0].mxu0
      %v555 = vadd.f32 %v353, %v554
      %v556 = vpop.f32.mrb[0].mxu0
      %v557 = vpop.f32.mrb[0].mxu0
      %v558 = vadd.f32 %v353, %v557
      %v559 = vpop.f32.mrb[0].mxu0
      %560 = vmatprep.mubr.bf16.mxu0 0
      %561 = vmatmul.mubr.bf16.gmra.mrb[0].mxu0 %v461
      %v562 = vpop.f32.mrb[0].mxu0
      %v563 = vadd.f32 %v353, %v562
      %v564 = vpop.f32.mrb[0].mxu0
      %v565 = vpop.f32.mrb[0].mxu0
      %v566 = vadd.f32 %v353, %v565
      %v567 = vpop.f32.mrb[0].mxu0
      %568 = vmatprep.mubr.bf16.mxu0 0
      %569 = vmatmul.mubr.bf16.gmra.mrb[0].mxu0 %v464
      %v570 = vpop.f32.mrb[0].mxu0
      %v571 = vadd.f32 %v353, %v570
      %v572 = vpop.f32.mrb[0].mxu0
      %v573 = vpop.f32.mrb[0].mxu0
      %v574 = vadd.f32 %v353, %v573
      %v575 = vpop.f32.mrb[0].mxu0
      %576 = vmatprep.mubr.bf16.mxu0 0
      %577 = vmatmul.mubr.bf16.gmra.mrb[0].mxu0 %v467
      %v578 = vpop.f32.mrb[0].mxu0
      %v579 = vadd.f32 %v353, %v578
      %v580 = vpop.f32.mrb[0].mxu0
      %v581 = vpop.f32.mrb[0].mxu0
      %v582 = vadd.f32 %v353, %v581
      %v583 = vpop.f32.mrb[0].mxu0
      %584 = vmatprep.mubr.bf16.mxu0 0
      %585 = vmatmul.mubr.bf16.gmra.mrb[0].mxu0 %v470
      %v586 = vpop.f32.mrb[0].mxu0
      %v587 = vadd.f32 %v353, %v586
      %v588 = vpop.f32.mrb[0].mxu0
      %v589 = vpop.f32.mrb[0].mxu0
      %v590 = vadd.f32 %v353, %v589
      %v591 = vpop.f32.mrb[0].mxu0
      %592 = vmatprep.mubr.bf16.mxu0 0
      %593 = vmatmul.mubr.bf16.gmra.mrb[0].mxu0 %v473
      %v594 = vpop.f32.mrb[0].mxu0
      %v595 = vadd.f32 %v353, %v594
      %v596 = vpop.f32.mrb[0].mxu0
      %v597 = vpop.f32.mrb[0].mxu0
      %v598 = vadd.f32 %v353, %v597
      %v599 = vpop.f32.mrb[0].mxu0
      %600 = vmatprep.mubr.bf16.mxu0 0
      %601 = vmatmul.mubr.bf16.gmra.mrb[0].mxu0 %v476
      %v602 = vpop.f32.mrb[0].mxu0
      %v603 = vadd.f32 %v353, %v602
      %v604 = vpop.f32.mrb[0].mxu0
      %v605 = vpop.f32.mrb[0].mxu0
      %v606 = vadd.f32 %v353, %v605
      %v607 = vpop.f32.mrb[0].mxu0
      %608 = vmatprep.mubr.bf16.mxu0 0
      %609 = vmatmul.mubr.bf16.gmra.mrb[0].mxu0 %v479
      %v610 = vpop.f32.mrb[0].mxu0
      %v611 = vadd.f32 %v353, %v610
      %v612 = vpop.f32.mrb[0].mxu0
      %v613 = vpop.f32.mrb[0].mxu0
      %v614 = vadd.f32 %v353, %v613
      %v615 = vpop.f32.mrb[0].mxu0
      %616 = vmatprep.mubr.bf16.mxu0 0
      %617 = vmatmul.mubr.bf16.gmra.mrb[0].mxu0 %v482
      %v618 = vpop.f32.mrb[0].mxu0
      %v619 = vadd.f32 %v353, %v618
      %v620 = vpop.f32.mrb[0].mxu0
      %v621 = vpop.f32.mrb[0].mxu0
      %v622 = vadd.f32 %v353, %v621
      %v623 = vpop.f32.mrb[0].mxu0
      %624 = vmatprep.mubr.bf16.mxu0 0
      %625 = vmatmul.mubr.bf16.gmra.mrb[0].mxu0 %v485
      %v626 = vpop.f32.mrb[0].mxu0
      %v627 = vadd.f32 %v353, %v626
      %v628 = vpop.f32.mrb[0].mxu0
      %v629 = vpop.f32.mrb[0].mxu0
      %v630 = vadd.f32 %v353, %v629
      %v631 = vpop.f32.mrb[0].mxu0
      %632 = vmatprep.mubr.bf16.mxu0 0
      %633 = vmatmul.mubr.bf16.gmra.mrb[0].mxu0 %v488
      %v634 = vpop.f32.mrb[0].mxu0
      %v635 = vadd.f32 %v353, %v634
      %v636 = vpop.f32.mrb[0].mxu0
      %v637 = vpop.f32.mrb[0].mxu0
      %v638 = vadd.f32 %v353, %v637
      %v639 = vpop.f32.mrb[0].mxu0
      %640 = vmatprep.mubr.bf16.mxu0 0
      %641 = vmatmul.mubr.bf16.gmra.mrb[0].mxu0 %v491
      %v642 = vpop.f32.mrb[0].mxu0
      %v643 = vadd.f32 %v353, %v642
      %v644 = vpop.f32.mrb[0].mxu0
      %v645 = vpop.f32.mrb[0].mxu0
      %v646 = vadd.f32 %v353, %v645
      %v647 = vpop.f32.mrb[0].mxu0
      %648 = vmatprep.mubr.bf16.mxu0 0
      %649 = vmatmul.mubr.bf16.gmra.mrb[0].mxu0 %v494
      %v650 = vpop.f32.mrb[0].mxu0
      %v651 = vadd.f32 %v353, %v650
      %v652 = vpop.f32.mrb[0].mxu0
      %v653 = vpop.f32.mrb[0].mxu0
      %v654 = vadd.f32 %v353, %v653
      %v655 = vpop.f32.mrb[0].mxu0
      %656 = vdwg.mxu0
      %v657 = vmax.f32 %v531, 0.0
      %v658 = vmax.f32 %v534, 0.0
      %v659 = vmax.f32 %v539, 0.0
      %v660 = vmax.f32 %v542, 0.0
      %v661 = vmax.f32 %v547, 0.0
      %v662 = vmax.f32 %v550, 0.0
      %v663 = vmax.f32 %v555, 0.0
      %v664 = vmax.f32 %v558, 0.0
      %v665 = vmax.f32 %v563, 0.0
      %v666 = vmax.f32 %v566, 0.0
      %v667 = vmax.f32 %v571, 0.0
      %v668 = vmax.f32 %v574, 0.0
      %v669 = vmax.f32 %v579, 0.0
      %v670 = vmax.f32 %v582, 0.0
      %v671 = vmax.f32 %v587, 0.0
      %v672 = vmax.f32 %v590, 0.0
      %v673 = vmax.f32 %v595, 0.0
      %v674 = vmax.f32 %v598, 0.0
      %v675 = vmax.f32 %v603, 0.0
      %v676 = vmax.f32 %v606, 0.0
      %v677 = vmax.f32 %v611, 0.0
      %v678 = vmax.f32 %v614, 0.0
      %v679 = vmax.f32 %v619, 0.0
      %v680 = vmax.f32 %v622, 0.0
      %v681 = vmax.f32 %v627, 0.0
      %v682 = vmax.f32 %v630, 0.0
      %v683 = vmax.f32 %v635, 0.0
      %v684 = vmax.f32 %v638, 0.0
      %v685 = vmax.f32 %v643, 0.0
      %v686 = vmax.f32 %v646, 0.0
      %v687 = vmax.f32 %v651, 0.0
      %v688 = vmax.f32 %v654, 0.0
      %v689 = vpack.c.bf16 %v658, %v657
      %v690 = vpack.c.bf16 %v660, %v659
      %v691 = vpack.c.bf16 %v662, %v661
      %v692 = vpack.c.bf16 %v664, %v663
      %v693 = vpack.c.bf16 %v666, %v665
      %v694 = vpack.c.bf16 %v668, %v667
      %v695 = vpack.c.bf16 %v670, %v669
      %v696 = vpack.c.bf16 %v672, %v671
      %v697 = vpack.c.bf16 %v674, %v673
      %v698 = vpack.c.bf16 %v676, %v675
      %v699 = vpack.c.bf16 %v678, %v677
      %v700 = vpack.c.bf16 %v680, %v679
      %v701 = vpack.c.bf16 %v682, %v681
      %v702 = vpack.c.bf16 %v684, %v683
      %v703 = vpack.c.bf16 %v686, %v685
      %v704 = vpack.c.bf16 %v688, %v687
      %v705 = vld [vmem:[%s3] sm:$0xf]
      %v706 = vld [vmem:[%s3 + $0x4] sm:$0xf]
      %v707 = vld [vmem:[%s3 + $0x8] sm:$0xf]
      %v708 = vld [vmem:[%s3 + $0xc] sm:$0xf]
      %v709 = vld [vmem:[%s3 + $0x10] sm:$0xf]
      %v710 = vld [vmem:[%s3 + $0x14] sm:$0xf]
      %v711 = vld [vmem:[%s3 + $0x18] sm:$0xf]
      %v712 = vld [vmem:[%s3 + $0x1c] sm:$0xf]
      %v713 = vld [vmem:[%s3 + $0x20] sm:$0xf]
      %v714 = vld [vmem:[%s3 + $0x24] sm:$0xf]
      %v715 = vld [vmem:[%s3 + $0x28] sm:$0xf]
      %v716 = vld [vmem:[%s3 + $0x2c] sm:$0xf]
      %v717 = vld [vmem:[%s3 + $0x30] sm:$0xf]
      %v718 = vld [vmem:[%s3 + $0x34] sm:$0xf]
      %v719 = vld [vmem:[%s3 + $0x38] sm:$0xf]
      %v720 = vld [vmem:[%s3 + $0x3c] sm:$0xf]
      %v721 = vld [vmem:[%s4] sm:$0x1]
      %v723 = vlaneseq
      %v724 = vshrl.u32 %v723, 7
      %v725 = vsub.s32 0, %v724
      %v726 = vrot.slane %v721, %v725
      %v744 = vunpack.c.l.b16 %v705
      %v745 = vunpack.c.l.b16 %v706
      %v746 = vunpack.c.l.b16 %v707
      %v747 = vunpack.c.l.b16 %v708
      %v748 = vunpack.c.l.b16 %v709
      %v749 = vunpack.c.l.b16 %v710
      %v750 = vunpack.c.l.b16 %v711
      %v751 = vunpack.c.l.b16 %v712
      %v752 = vunpack.c.l.b16 %v713
      %v753 = vunpack.c.l.b16 %v714
      %v754 = vunpack.c.l.b16 %v715
      %v755 = vunpack.c.l.b16 %v716
      %v756 = vunpack.c.l.b16 %v717
      %v757 = vunpack.c.l.b16 %v718
      %v758 = vunpack.c.l.b16 %v719
      %v759 = vunpack.c.l.b16 %v720
      %v760 = vpack.c.b16 %v745, %v744
      %v761 = vpack.c.b16 %v747, %v746
      %v762 = vpack.c.b16 %v749, %v748
      %v763 = vpack.c.b16 %v751, %v750
      %v764 = vpack.c.b16 %v753, %v752
      %v765 = vpack.c.b16 %v755, %v754
      %v766 = vpack.c.b16 %v757, %v756
      %v767 = vpack.c.b16 %v759, %v758
      %776 = vmatprep.subr.bf16.mxu0 0
      %777 = vmatpush1.bf16.msra.mxu0 %v760
      %778 = vmatprep.subr.bf16.mxu0 0
      %779 = vmatpush1.bf16.msra.mxu0 %v761
      %780 = vmatprep.subr.bf16.mxu0 0
      %781 = vmatpush1.bf16.msra.mxu0 %v762
      %782 = vmatprep.subr.bf16.mxu0 0
      %783 = vmatpush1.bf16.msra.mxu0 %v763
      %784 = vmatprep.subr.bf16.mxu0 0
      %785 = vmatpush1.bf16.msra.mxu0 %v764
      %786 = vmatprep.subr.bf16.mxu0 0
      %787 = vmatpush1.bf16.msra.mxu0 %v765
      %788 = vmatprep.subr.bf16.mxu0 0
      %789 = vmatpush1.bf16.msra.mxu0 %v766
      %790 = vmatprep.subr.bf16.mxu0 0
      %791 = vmatpush1.bf16.msra.mxu0 %v767
      %792 = vmatprep.subr.bf16.mxu0 0
      %793 = vmatpush1.bf16.msra.mxu0 0
      %794 = vmatprep.subr.bf16.mxu0 0
      %795 = vmatpush1.bf16.msra.mxu0 0
      %796 = vmatprep.subr.bf16.mxu0 0
      %797 = vmatpush1.bf16.msra.mxu0 0
      %798 = vmatprep.subr.bf16.mxu0 0
      %799 = vmatpush1.bf16.msra.mxu0 0
      %800 = vmatprep.subr.bf16.mxu0 0
      %801 = vmatpush1.bf16.msra.mxu0 0
      %802 = vmatprep.subr.bf16.mxu0 0
      %803 = vmatpush1.bf16.msra.mxu0 0
      %804 = vmatprep.subr.bf16.mxu0 0
      %805 = vmatpush1.bf16.msra.mxu0 0
      %806 = vmatprep.subr.bf16.mxu0 0
      %807 = vmatpush1.bf16.msra.mxu0 0
      %808 = vmatprep.mubr.bf16.mxu0 0
      %809 = vmatmul.mubr.bf16.gmra.mrb[0].mxu0 %v689
      %v810 = vpop.f32.mrb[0].mxu0
      %v811 = vadd.f32 %v726, %v810
      %v812 = vpop.f32.mrb[0].mxu0
      %v813 = vpop.f32.mrb[0].mxu0
      %v814 = vadd.f32 %v726, %v813
      %v815 = vpop.f32.mrb[0].mxu0
      %816 = vmatprep.mubr.bf16.mxu0 0
      %817 = vmatmul.mubr.bf16.gmra.mrb[0].mxu0 %v690
      %v818 = vpop.f32.mrb[0].mxu0
      %v819 = vadd.f32 %v726, %v818
      %v820 = vpop.f32.mrb[0].mxu0
      %v821 = vpop.f32.mrb[0].mxu0
      %v822 = vadd.f32 %v726, %v821
      %v823 = vpop.f32.mrb[0].mxu0
      %824 = vmatprep.mubr.bf16.mxu0 0
      %825 = vmatmul.mubr.bf16.gmra.mrb[0].mxu0 %v691
      %v826 = vpop.f32.mrb[0].mxu0
      %v827 = vadd.f32 %v726, %v826
      %v828 = vpop.f32.mrb[0].mxu0
      %v829 = vpop.f32.mrb[0].mxu0
      %v830 = vadd.f32 %v726, %v829
      %v831 = vpop.f32.mrb[0].mxu0
      %832 = vmatprep.mubr.bf16.mxu0 0
      %833 = vmatmul.mubr.bf16.gmra.mrb[0].mxu0 %v692
      %v834 = vpop.f32.mrb[0].mxu0
      %v835 = vadd.f32 %v726, %v834
      %v836 = vpop.f32.mrb[0].mxu0
      %v837 = vpop.f32.mrb[0].mxu0
      %v838 = vadd.f32 %v726, %v837
      %v839 = vpop.f32.mrb[0].mxu0
      %840 = vmatprep.mubr.bf16.mxu0 0
      %841 = vmatmul.mubr.bf16.gmra.mrb[0].mxu0 %v693
      %v842 = vpop.f32.mrb[0].mxu0
      %v843 = vadd.f32 %v726, %v842
      %v844 = vpop.f32.mrb[0].mxu0
      %v845 = vpop.f32.mrb[0].mxu0
      %v846 = vadd.f32 %v726, %v845
      %v847 = vpop.f32.mrb[0].mxu0
      %848 = vmatprep.mubr.bf16.mxu0 0
      %849 = vmatmul.mubr.bf16.gmra.mrb[0].mxu0 %v694
      %v850 = vpop.f32.mrb[0].mxu0
      %v851 = vadd.f32 %v726, %v850
      %v852 = vpop.f32.mrb[0].mxu0
      %v853 = vpop.f32.mrb[0].mxu0
      %v854 = vadd.f32 %v726, %v853
      %v855 = vpop.f32.mrb[0].mxu0
      %856 = vmatprep.mubr.bf16.mxu0 0
      %857 = vmatmul.mubr.bf16.gmra.mrb[0].mxu0 %v695
      %v858 = vpop.f32.mrb[0].mxu0
      %v859 = vadd.f32 %v726, %v858
      %v860 = vpop.f32.mrb[0].mxu0
      %v861 = vpop.f32.mrb[0].mxu0
      %v862 = vadd.f32 %v726, %v861
      %v863 = vpop.f32.mrb[0].mxu0
      %864 = vmatprep.mubr.bf16.mxu0 0
      %865 = vmatmul.mubr.bf16.gmra.mrb[0].mxu0 %v696
      %v866 = vpop.f32.mrb[0].mxu0
      %v867 = vadd.f32 %v726, %v866
      %v868 = vpop.f32.mrb[0].mxu0
      %v869 = vpop.f32.mrb[0].mxu0
      %v870 = vadd.f32 %v726, %v869
      %v871 = vpop.f32.mrb[0].mxu0
      %872 = vmatprep.mubr.bf16.mxu0 0
      %873 = vmatmul.mubr.bf16.gmra.mrb[0].mxu0 %v697
      %v874 = vpop.f32.mrb[0].mxu0
      %v875 = vadd.f32 %v726, %v874
      %v876 = vpop.f32.mrb[0].mxu0
      %v877 = vpop.f32.mrb[0].mxu0
      %v878 = vadd.f32 %v726, %v877
      %v879 = vpop.f32.mrb[0].mxu0
      %880 = vmatprep.mubr.bf16.mxu0 0
      %881 = vmatmul.mubr.bf16.gmra.mrb[0].mxu0 %v698
      %v882 = vpop.f32.mrb[0].mxu0
      %v883 = vadd.f32 %v726, %v882
      %v884 = vpop.f32.mrb[0].mxu0
      %v885 = vpop.f32.mrb[0].mxu0
      %v886 = vadd.f32 %v726, %v885
      %v887 = vpop.f32.mrb[0].mxu0
      %888 = vmatprep.mubr.bf16.mxu0 0
      %889 = vmatmul.mubr.bf16.gmra.mrb[0].mxu0 %v699
      %v890 = vpop.f32.mrb[0].mxu0
      %v891 = vadd.f32 %v726, %v890
      %v892 = vpop.f32.mrb[0].mxu0
      %v893 = vpop.f32.mrb[0].mxu0
      %v894 = vadd.f32 %v726, %v893
      %v895 = vpop.f32.mrb[0].mxu0
      %896 = vmatprep.mubr.bf16.mxu0 0
      %897 = vmatmul.mubr.bf16.gmra.mrb[0].mxu0 %v700
      %v898 = vpop.f32.mrb[0].mxu0
      %v899 = vadd.f32 %v726, %v898
      %v900 = vpop.f32.mrb[0].mxu0
      %v901 = vpop.f32.mrb[0].mxu0
      %v902 = vadd.f32 %v726, %v901
      %v903 = vpop.f32.mrb[0].mxu0
      %904 = vmatprep.mubr.bf16.mxu0 0
      %905 = vmatmul.mubr.bf16.gmra.mrb[0].mxu0 %v701
      %v906 = vpop.f32.mrb[0].mxu0
      %v907 = vadd.f32 %v726, %v906
      %v908 = vpop.f32.mrb[0].mxu0
      %v909 = vpop.f32.mrb[0].mxu0
      %v910 = vadd.f32 %v726, %v909
      %v911 = vpop.f32.mrb[0].mxu0
      %912 = vmatprep.mubr.bf16.mxu0 0
      %913 = vmatmul.mubr.bf16.gmra.mrb[0].mxu0 %v702
      %v914 = vpop.f32.mrb[0].mxu0
      %v915 = vadd.f32 %v726, %v914
      %v916 = vpop.f32.mrb[0].mxu0
      %v917 = vpop.f32.mrb[0].mxu0
      %v918 = vadd.f32 %v726, %v917
      %v919 = vpop.f32.mrb[0].mxu0
      %920 = vmatprep.mubr.bf16.mxu0 0
      %921 = vmatmul.mubr.bf16.gmra.mrb[0].mxu0 %v703
      %v922 = vpop.f32.mrb[0].mxu0
      %v923 = vadd.f32 %v726, %v922
      %v924 = vpop.f32.mrb[0].mxu0
      %v925 = vpop.f32.mrb[0].mxu0
      %v926 = vadd.f32 %v726, %v925
      %v927 = vpop.f32.mrb[0].mxu0
      %928 = vmatprep.mubr.bf16.mxu0 0
      %929 = vmatmul.mubr.bf16.gmra.mrb[0].mxu0 %v704
      %v930 = vpop.f32.mrb[0].mxu0
      %v931 = vadd.f32 %v726, %v930
      %v932 = vpop.f32.mrb[0].mxu0
      %v933 = vpop.f32.mrb[0].mxu0
      %v934 = vadd.f32 %v726, %v933
      %v935 = vpop.f32.mrb[0].mxu0
      %936 = vdwg.mxu0
      %v937 = vmax.f32 %v811, 0.0
      %v938 = vmax.f32 %v814, 0.0
      %v939 = vmax.f32 %v819, 0.0
      %v940 = vmax.f32 %v822, 0.0
      %v941 = vmax.f32 %v827, 0.0
      %v942 = vmax.f32 %v830, 0.0
      %v943 = vmax.f32 %v835, 0.0
      %v944 = vmax.f32 %v838, 0.0
      %v945 = vmax.f32 %v843, 0.0
      %v946 = vmax.f32 %v846, 0.0
      %v947 = vmax.f32 %v851, 0.0
      %v948 = vmax.f32 %v854, 0.0
      %v949 = vmax.f32 %v859, 0.0
      %v950 = vmax.f32 %v862, 0.0
      %v951 = vmax.f32 %v867, 0.0
      %v952 = vmax.f32 %v870, 0.0
      %v953 = vmax.f32 %v875, 0.0
      %v954 = vmax.f32 %v878, 0.0
      %v955 = vmax.f32 %v883, 0.0
      %v956 = vmax.f32 %v886, 0.0
      %v957 = vmax.f32 %v891, 0.0
      %v958 = vmax.f32 %v894, 0.0
      %v959 = vmax.f32 %v899, 0.0
      %v960 = vmax.f32 %v902, 0.0
      %v961 = vmax.f32 %v907, 0.0
      %v962 = vmax.f32 %v910, 0.0
      %v963 = vmax.f32 %v915, 0.0
      %v964 = vmax.f32 %v918, 0.0
      %v965 = vmax.f32 %v923, 0.0
      %v966 = vmax.f32 %v926, 0.0
      %v967 = vmax.f32 %v931, 0.0
      %v968 = vmax.f32 %v934, 0.0
      %v969 = vld [vmem:[#allocation2] sm:$0x1]
      %v970 = vadd.f32 %v937, %v938
      %v971 = vadd.f32 %v970, %v939
      %v972 = vadd.f32 %v971, %v940
      %v973 = vadd.f32 %v972, %v941
      %v974 = vadd.f32 %v973, %v942
      %v975 = vadd.f32 %v974, %v943
      %v976 = vadd.f32 %v975, %v944
      %v977 = vadd.f32 %v976, %v945
      %v978 = vadd.f32 %v977, %v946
      %v979 = vadd.f32 %v978, %v947
      %v980 = vadd.f32 %v979, %v948
      %v981 = vadd.f32 %v980, %v949
      %v982 = vadd.f32 %v981, %v950
      %v983 = vadd.f32 %v982, %v951
      %v984 = vadd.f32 %v983, %v952
      %v985 = vadd.f32 %v984, %v953
      %v986 = vadd.f32 %v985, %v954
      %v987 = vadd.f32 %v986, %v955
      %v988 = vadd.f32 %v987, %v956
      %v989 = vadd.f32 %v988, %v957
      %v990 = vadd.f32 %v989, %v958
      %v991 = vadd.f32 %v990, %v959
      %v992 = vadd.f32 %v991, %v960
      %v993 = vadd.f32 %v992, %v961
      %v994 = vadd.f32 %v993, %v962
      %v995 = vadd.f32 %v994, %v963
      %v996 = vadd.f32 %v995, %v964
      %v997 = vadd.f32 %v996, %v965
      %v998 = vadd.f32 %v997, %v966
      %v999 = vadd.f32 %v998, %v967
      %v1000 = vadd.f32 %v999, %v968
      %v1001 = vrot.slane %v1000, 4
      %v1002 = vadd.f32 %v1000, %v1001
      %v1003 = vrot.slane %v1002, 2
      %v1004 = vadd.f32 %v1002, %v1003
      %v1005 = vrot.slane %v1004, 1
      %v1006 = vadd.f32 %v1004, %v1005
      %v1007 = vadd.f32 %v969, %v1006
      %1008 = vst [vmem:[#allocation2] sm:$0x1] %v1007
      // Predicated region
      $region53: #{melanoma_forward.1} parent=47 // pred_check
        %p1009 = pneg %p307
      $region54: #{melanoma_forward.1} parent=47 // pred_check_branch
        %1011 = sbr.rel (%p1009) target = $region56
      $region55: #{melanoma_forward.1} parent=47 // pred_region
        %v1012 = vld [vmem:[#allocation2] sm:$0x1]
        %v1013 = vld [vmem:[%s5] sm:$0x1]
        %v1014 = vmul.f32 %v1012, %v1013
        %vm1015 = vcmask 1040384
        %v1016 = vsel %vm1015, %v1014, 0.0
        %1017 = vadd.xlane.f32.xlu0 %v1016
        %v1018 = vpop.xlane.xlu0 %1017
        %v1019 = vmul.f32 %v1018, 0.00390625
        %s1020 = sld [smem:[#allocation3]]
        %v1021 = vstv %s1020
        %v1022 = vadd.f32 %v1019, %v1021
        %v1023 = vlaneseq
        %v1024 = vshrl.u32 %v1023, 7
        %v1025 = vsub.s32 0, %v1024
        %v1026 = vrot.slane %v1022, %v1025
        %1027 = vst [vmem:[%s305] sm:$0xff] %v1026
      $region56: #{melanoma_forward.1} parent=47 // pred_fallthru
        _
      %p1028 = scmp.lt.s32.totalorder %s23, 1
      %s1029 = scalar_select %p1028, %s23, 1
      %s1030 = smul.addr %s1029, 8
      %s1031 = scalar_lea.vmem %s7, %s1030
      // Predicated region
      $region57: #{melanoma_forward.1} parent=47 // pred_check
        %p1032 = pneg %p203
      $region58: #{melanoma_forward.1} parent=47 // pred_check_branch
        %1034 = sbr.rel (%p1032) target = $region60
      $region59: #{melanoma_forward.1} parent=47 // pred_region
        _
      $region60: #{melanoma_forward.1} parent=47 // pred_fallthru
        _
    $region48: #{melanoma_forward.1} parent=5 // pred_fallthru
      _
    %p1035 = scmp.le.s32.totalorder 2, %s14
    // Predicated region
    $region61: #{melanoma_forward.1} parent=5 // pred_check
      %p1036 = pneg %p1035
    $region62: #{melanoma_forward.1} parent=5 // pred_check_branch
      %1038 = sbr.rel (%p1036) target = $region64
    $region63: #{melanoma_forward.1} parent=5 // pred_region
      %s1039 = ssub.s32 %s14, 2
      // Predicated region
      $region65: #{melanoma_forward.1} parent=63 // pred_check
        %p1040 = pneg %p209
      $region66: #{melanoma_forward.1} parent=63 // pred_check_branch
        %1042 = sbr.rel (%p1040) target = $region68
      $region67: #{melanoma_forward.1} parent=63 // pred_region
        %p1043 = scmp.lt.s32.totalorder %s25, 1
        %s1044 = scalar_select %p1043, %s25, 1
        %s1045 = smul.addr %s1044, 8
        %s1046 = scalar_lea.vmem %s7, %s1045
      $region68: #{melanoma_forward.1} parent=63 // pred_fallthru
        _
    $region64: #{melanoma_forward.1} parent=5 // pred_fallthru
      _
  $region6: #{melanoma_forward.1} parent=0 // loop_footer
    %s18 = sadd.s32 1, %s14
  $region7: #{melanoma_forward.1} parent=0 // loop_footer_branch
    %13 = sbr.rel target = $region3
  $region8: #{melanoma_forward.1} parent=0 // loop_exit
    _

</llo_original>
